<compile_context>
chip_gen: v7x
topology: tpu7x:2x2x1
jax: 0.10.0
libtpu: 0.0.40
codegen_flags: <defaults>
</compile_context>

<pallas_src>
import jax
import jax.numpy as jnp
from jax.experimental import pallas as pl
from jax.experimental.pallas import tpu as pltpu


def _rnn_forecast_kernel(x_ref, wih_ref, whh_ref, bias_ref, wfc_ref, bfc_ref,
                         out_ref, z_ref):
    """Whole forward in one invocation. x_ref is time-major 2-D (T*B, D)."""
    TB, _ = x_ref.shape
    H = whh_ref.shape[0]
    B, _ = out_ref.shape
    T = TB // B

    # ---- Hoisted (non-recurrent) input projection: one big matmul + fused bias,
    #      staged into VMEM scratch (keeps the serial loop's live set tiny). ----
    z_ref[...] = (
        jnp.dot(x_ref[...], wih_ref[...], preferred_element_type=jnp.float32)
        + bias_ref[...]
    )

    w_hh = whh_ref[...]          # loaded once, reused every step
    mm_dtype = w_hh.dtype        # f32 by default; bf16 if wrapper casts weights

    h = jnp.zeros((B, H), jnp.float32)

    if T <= 16:
        # Small static T: fully unrolled at Python level; z_t is a STATIC slice
        # of the scratch -> plain aligned vector loads on the serial critical path.
        for t in range(T):
            z_t = z_ref[pl.ds(t * B, B), :]
            h = jnp.tanh(
                z_t
                + jnp.dot(h.astype(mm_dtype), w_hh,
                          preferred_element_type=jnp.float32))
    else:
        # Large T: rolled loop (guards code size / vreg pressure), with an
        # alignment-hinted dynamic slice of the scratch.
        def step(t, h):
            z_t = z_ref[pl.ds(pl.multiple_of(t * B, B), B), :]
            return jnp.tanh(
                z_t
                + jnp.dot(h.astype(mm_dtype), w_hh,
                          preferred_element_type=jnp.float32))
        h = jax.lax.fori_loop(0, T, step, h, unroll=False)

    # ---- Output head ----
    out_ref[...] = (
        jnp.dot(h.astype(wfc_ref.dtype), wfc_ref[...],
                preferred_element_type=jnp.float32)
        + bfc_ref[...]
    ).astype(out_ref.dtype)


def rnn_forecast(x, params, *, matmul_dtype=None):
    """x: (B, T, D) batch_first (PyTorch convention). Returns (B, output_dim).

    matmul_dtype: optional (e.g. jnp.bfloat16 on v6e/v7x) — casts x and the
    weight matrices for the MXU while keeping f32 accumulation, biases and
    activations. Default None keeps everything f32 (matches PyTorch to ~1e-5).
    """
    w_ih, w_hh, b_ih, b_hh, w_fc, b_fc = params
    B, T, D = x.shape
    H = w_ih.shape[1]
    O = w_fc.shape[1]

    # Single layout-plumbing HLO before the pallas_call: time-major 2-D slab.
    # (XLA realizes swapaxes+reshape as one tiny copy; the kernel then never
    # reshapes a 3-D ref.)
    x_tm = jnp.swapaxes(x, 0, 1).reshape(T * B, D)

    # Fuse the two RNN biases into one (1, H) row; keep the fc bias as (1, O).
    bias = (b_ih + b_hh).reshape(1, H)
    b_fc2 = b_fc.reshape(1, O)

    if matmul_dtype is not None:
        x_tm = x_tm.astype(matmul_dtype)
        w_ih = w_ih.astype(matmul_dtype)
        w_hh = w_hh.astype(matmul_dtype)
        w_fc = w_fc.astype(matmul_dtype)

    grid_spec = pltpu.PrefetchScalarGridSpec(
        num_scalar_prefetch=0,
        grid=(1,),                                       # time loop lives in-kernel
        in_specs=[
            pl.BlockSpec((T * B, D), lambda i: (0, 0)),  # whole sequence, 2-D
            pl.BlockSpec((D, H),     lambda i: (0, 0)),  # W_ih^T
            pl.BlockSpec((H, H),     lambda i: (0, 0)),  # W_hh^T
            pl.BlockSpec((1, H),     lambda i: (0, 0)),  # fused bias (b_ih + b_hh)
            pl.BlockSpec((H, O),     lambda i: (0, 0)),  # W_fc^T
            pl.BlockSpec((1, O),     lambda i: (0, 0)),  # b_fc
        ],
        out_specs=pl.BlockSpec((B, O), lambda i: (0, 0)),
        scratch_shapes=[pltpu.VMEM((T * B, H), jnp.float32)],  # staged z
    )

    return pl.pallas_call(
        _rnn_forecast_kernel,
        out_shape=jax.ShapeDtypeStruct((B, O), jnp.float32),
        grid_spec=grid_spec,
        compiler_params=pltpu.CompilerParams(
            dimension_semantics=("arbitrary",),
        ),
    )(x_tm, w_ih, w_hh, bias, w_fc, b_fc2)


def init_params(key, input_dim, hidden_dim, output_dim):
    """Deterministic init mimicking PyTorch's U(-1/sqrt(H), 1/sqrt(H)).
    Weights are stored PRE-TRANSPOSED (right-multiply form):
    W_ih^T (D,H), W_hh^T (H,H), W_fc^T (H,O)."""
    k = jax.random.split(key, 6)
    s_rnn = 1.0 / jnp.sqrt(hidden_dim)
    s_fc = 1.0 / jnp.sqrt(hidden_dim)
    w_ih = jax.random.uniform(k[0], (input_dim, hidden_dim), jnp.float32, -s_rnn, s_rnn)
    w_hh = jax.random.uniform(k[1], (hidden_dim, hidden_dim), jnp.float32, -s_rnn, s_rnn)
    b_ih = jax.random.uniform(k[2], (hidden_dim,), jnp.float32, -s_rnn, s_rnn)
    b_hh = jax.random.uniform(k[3], (hidden_dim,), jnp.float32, -s_rnn, s_rnn)
    w_fc = jax.random.uniform(k[4], (hidden_dim, output_dim), jnp.float32, -s_fc, s_fc)
    b_fc = jax.random.uniform(k[5], (output_dim,), jnp.float32, -s_fc, s_fc)
    return (w_ih, w_hh, b_ih, b_hh, w_fc, b_fc)


def rnn_forecast_ref(x, params):
    """Pure-JAX reference of the PyTorch forward, for correctness checking."""
    w_ih, w_hh, b_ih, b_hh, w_fc, b_fc = params
    B, T, D = x.shape
    H = w_ih.shape[1]

    def step(h, x_t):
        h_new = jnp.tanh(x_t @ w_ih + b_ih + h @ w_hh + b_hh)
        return h_new, None

    h0 = jnp.zeros((B, H), jnp.float32)
    h_T, _ = jax.lax.scan(step, h0, jnp.transpose(x, (1, 0, 2)))
    return h_T @ w_fc + b_fc


if __name__ == "__main__":
    # Small shapes consistent with the module: batch=2, seq=8, input_dim=4,
    # hidden_dim=32, output_dim=4.
    B, T, D, H, O = 2, 8, 4, 32, 4

    key = jax.random.PRNGKey(0)
    kx, kp = jax.random.split(key)
    x = jax.random.normal(kx, (B, T, D), dtype=jnp.float32)
    params = init_params(kp, D, H, O)

    y = rnn_forecast(x, params)
    jax.block_until_ready(y)

    y_ref = rnn_forecast_ref(x, params)
    assert y.shape == (B, O)
    assert jnp.allclose(y, y_ref, atol=1e-5, rtol=1e-5), "mismatch vs JAX reference"

    print("KERNEL_OK")
</pallas_src>

<mosaic_0001>
module attributes {stable_mosaic.version = 11 : i64} {
  func.func @_rnn_forecast_kernel(%arg0: i32, %arg1: memref<16x4xf32, #tpu.memory_space<vmem>>, %arg2: memref<4x32xf32, #tpu.memory_space<vmem>>, %arg3: memref<32x32xf32, #tpu.memory_space<vmem>>, %arg4: memref<1x32xf32, #tpu.memory_space<vmem>>, %arg5: memref<32x4xf32, #tpu.memory_space<vmem>>, %arg6: memref<1x4xf32, #tpu.memory_space<vmem>>, %arg7: memref<2x4xf32, #tpu.memory_space<vmem>>, %arg8: memref<16x32xf32, #tpu.memory_space<vmem>>) attributes {dimension_semantics = [#tpu.dimension_semantics<arbitrary>], iteration_bounds = array<i64: 1>, scalar_prefetch = 0 : i64, scratch_operands = 1 : i64, tpu.core_type = #tpu.core_type<tc>, window_params = [{pipeline_mode = #tpu.pipeline_mode<synchronous>, transform_indices = @transform_0, window_bounds = array<i64: 16, 4>}, {pipeline_mode = #tpu.pipeline_mode<synchronous>, transform_indices = @transform_1, window_bounds = array<i64: 4, 32>}, {pipeline_mode = #tpu.pipeline_mode<synchronous>, transform_indices = @transform_2, window_bounds = array<i64: 32, 32>}, {pipeline_mode = #tpu.pipeline_mode<synchronous>, transform_indices = @transform_3, window_bounds = array<i64: 1, 32>}, {pipeline_mode = #tpu.pipeline_mode<synchronous>, transform_indices = @transform_4, window_bounds = array<i64: 32, 4>}, {pipeline_mode = #tpu.pipeline_mode<synchronous>, transform_indices = @transform_5, window_bounds = array<i64: 1, 4>}, {pipeline_mode = #tpu.pipeline_mode<synchronous>, transform_indices = @transform_6, window_bounds = array<i64: 2, 4>}]} {
    %c0 = arith.constant 0 : index
    %c0_0 = arith.constant 0 : index
    %0 = vector.load %arg1[%c0, %c0_0] : memref<16x4xf32, #tpu.memory_space<vmem>>, vector<16x4xf32>
    %c0_1 = arith.constant 0 : index
    %c0_2 = arith.constant 0 : index
    %1 = vector.load %arg2[%c0_1, %c0_2] : memref<4x32xf32, #tpu.memory_space<vmem>>, vector<4x32xf32>
    %cst = arith.constant dense<0.000000e+00> : vector<16x32xf32>
    %2 = tpu.matmul %0, %1, %cst {dimension_numbers = #tpu.dot_dimension_numbers<[1], [0], [0], [1], [0, 0, 1, 1], [], []>} : vector<16x4xf32>, vector<4x32xf32>, vector<16x32xf32> -> vector<16x32xf32>
    %c0_3 = arith.constant 0 : index
    %c0_4 = arith.constant 0 : index
    %3 = vector.load %arg4[%c0_3, %c0_4] : memref<1x32xf32, #tpu.memory_space<vmem>>, vector<1x32xf32>
    %4 = vector.broadcast %3 : vector<1x32xf32> to vector<16x32xf32>
    %5 = arith.addf %2, %4 : vector<16x32xf32>
    %c0_5 = arith.constant 0 : index
    %c0_6 = arith.constant 0 : index
    %6 = vector.load %arg8[%c0_5, %c0_6] : memref<16x32xf32, #tpu.memory_space<vmem>>, vector<16x32xf32>
    tpu.vector_store %arg8[%c0_5, %c0_6], %5 {strides = array<i32>} : memref<16x32xf32, #tpu.memory_space<vmem>>, vector<16x32xf32>,
    %c0_7 = arith.constant 0 : index
    %c0_8 = arith.constant 0 : index
    %7 = vector.load %arg3[%c0_7, %c0_8] : memref<32x32xf32, #tpu.memory_space<vmem>>, vector<32x32xf32>
    %cst_9 = arith.constant 0.000000e+00 : f32
    %8 = vector.broadcast %cst_9 : f32 to vector<2x32xf32>
    %c0_10 = arith.constant 0 : index
    %c0_11 = arith.constant 0 : index
    %9 = vector.load %arg8[%c0_10, %c0_11] : memref<16x32xf32, #tpu.memory_space<vmem>>, vector<2x32xf32>
    %cst_12 = arith.constant dense<0.000000e+00> : vector<2x32xf32>
    %10 = tpu.matmul %8, %7, %cst_12 {dimension_numbers = #tpu.dot_dimension_numbers<[1], [0], [0], [1], [0, 0, 1, 1], [], []>} : vector<2x32xf32>, vector<32x32xf32>, vector<2x32xf32> -> vector<2x32xf32>
    %11 = arith.addf %9, %10 : vector<2x32xf32>
    %12 = math.tanh %11 : vector<2x32xf32>
    %c2 = arith.constant 2 : index
    %c0_13 = arith.constant 0 : index
    %13 = vector.load %arg8[%c2, %c0_13] : memref<16x32xf32, #tpu.memory_space<vmem>>, vector<2x32xf32>
    %cst_14 = arith.constant dense<0.000000e+00> : vector<2x32xf32>
    %14 = tpu.matmul %12, %7, %cst_14 {dimension_numbers = #tpu.dot_dimension_numbers<[1], [0], [0], [1], [0, 0, 1, 1], [], []>} : vector<2x32xf32>, vector<32x32xf32>, vector<2x32xf32> -> vector<2x32xf32>
    %15 = arith.addf %13, %14 : vector<2x32xf32>
    %16 = math.tanh %15 : vector<2x32xf32>
    %c4 = arith.constant 4 : index
    %c0_15 = arith.constant 0 : index
    %17 = vector.load %arg8[%c4, %c0_15] : memref<16x32xf32, #tpu.memory_space<vmem>>, vector<2x32xf32>
    %cst_16 = arith.constant dense<0.000000e+00> : vector<2x32xf32>
    %18 = tpu.matmul %16, %7, %cst_16 {dimension_numbers = #tpu.dot_dimension_numbers<[1], [0], [0], [1], [0, 0, 1, 1], [], []>} : vector<2x32xf32>, vector<32x32xf32>, vector<2x32xf32> -> vector<2x32xf32>
    %19 = arith.addf %17, %18 : vector<2x32xf32>
    %20 = math.tanh %19 : vector<2x32xf32>
    %c6 = arith.constant 6 : index
    %c0_17 = arith.constant 0 : index
    %21 = vector.load %arg8[%c6, %c0_17] : memref<16x32xf32, #tpu.memory_space<vmem>>, vector<2x32xf32>
    %cst_18 = arith.constant dense<0.000000e+00> : vector<2x32xf32>
    %22 = tpu.matmul %20, %7, %cst_18 {dimension_numbers = #tpu.dot_dimension_numbers<[1], [0], [0], [1], [0, 0, 1, 1], [], []>} : vector<2x32xf32>, vector<32x32xf32>, vector<2x32xf32> -> vector<2x32xf32>
    %23 = arith.addf %21, %22 : vector<2x32xf32>
    %24 = math.tanh %23 : vector<2x32xf32>
    %c8 = arith.constant 8 : index
    %c0_19 = arith.constant 0 : index
    %25 = vector.load %arg8[%c8, %c0_19] : memref<16x32xf32, #tpu.memory_space<vmem>>, vector<2x32xf32>
    %cst_20 = arith.constant dense<0.000000e+00> : vector<2x32xf32>
    %26 = tpu.matmul %24, %7, %cst_20 {dimension_numbers = #tpu.dot_dimension_numbers<[1], [0], [0], [1], [0, 0, 1, 1], [], []>} : vector<2x32xf32>, vector<32x32xf32>, vector<2x32xf32> -> vector<2x32xf32>
    %27 = arith.addf %25, %26 : vector<2x32xf32>
    %28 = math.tanh %27 : vector<2x32xf32>
    %c10 = arith.constant 10 : index
    %c0_21 = arith.constant 0 : index
    %29 = vector.load %arg8[%c10, %c0_21] : memref<16x32xf32, #tpu.memory_space<vmem>>, vector<2x32xf32>
    %cst_22 = arith.constant dense<0.000000e+00> : vector<2x32xf32>
    %30 = tpu.matmul %28, %7, %cst_22 {dimension_numbers = #tpu.dot_dimension_numbers<[1], [0], [0], [1], [0, 0, 1, 1], [], []>} : vector<2x32xf32>, vector<32x32xf32>, vector<2x32xf32> -> vector<2x32xf32>
    %31 = arith.addf %29, %30 : vector<2x32xf32>
    %32 = math.tanh %31 : vector<2x32xf32>
    %c12 = arith.constant 12 : index
    %c0_23 = arith.constant 0 : index
    %33 = vector.load %arg8[%c12, %c0_23] : memref<16x32xf32, #tpu.memory_space<vmem>>, vector<2x32xf32>
    %cst_24 = arith.constant dense<0.000000e+00> : vector<2x32xf32>
    %34 = tpu.matmul %32, %7, %cst_24 {dimension_numbers = #tpu.dot_dimension_numbers<[1], [0], [0], [1], [0, 0, 1, 1], [], []>} : vector<2x32xf32>, vector<32x32xf32>, vector<2x32xf32> -> vector<2x32xf32>
    %35 = arith.addf %33, %34 : vector<2x32xf32>
    %36 = math.tanh %35 : vector<2x32xf32>
    %c14 = arith.constant 14 : index
    %c0_25 = arith.constant 0 : index
    %37 = vector.load %arg8[%c14, %c0_25] : memref<16x32xf32, #tpu.memory_space<vmem>>, vector<2x32xf32>
    %cst_26 = arith.constant dense<0.000000e+00> : vector<2x32xf32>
    %38 = tpu.matmul %36, %7, %cst_26 {dimension_numbers = #tpu.dot_dimension_numbers<[1], [0], [0], [1], [0, 0, 1, 1], [], []>} : vector<2x32xf32>, vector<32x32xf32>, vector<2x32xf32> -> vector<2x32xf32>
    %39 = arith.addf %37, %38 : vector<2x32xf32>
    %40 = math.tanh %39 : vector<2x32xf32>
    %c0_27 = arith.constant 0 : index
    %c0_28 = arith.constant 0 : index
    %41 = vector.load %arg5[%c0_27, %c0_28] : memref<32x4xf32, #tpu.memory_space<vmem>>, vector<32x4xf32>
    %cst_29 = arith.constant dense<0.000000e+00> : vector<2x4xf32>
    %42 = tpu.matmul %40, %41, %cst_29 {dimension_numbers = #tpu.dot_dimension_numbers<[1], [0], [0], [1], [0, 0, 1, 1], [], []>} : vector<2x32xf32>, vector<32x4xf32>, vector<2x4xf32> -> vector<2x4xf32>
    %c0_30 = arith.constant 0 : index
    %c0_31 = arith.constant 0 : index
    %43 = vector.load %arg6[%c0_30, %c0_31] : memref<1x4xf32, #tpu.memory_space<vmem>>, vector<1x4xf32>
    %44 = vector.broadcast %43 : vector<1x4xf32> to vector<2x4xf32>
    %45 = arith.addf %42, %44 : vector<2x4xf32>
    %c0_32 = arith.constant 0 : index
    %c0_33 = arith.constant 0 : index
    %46 = vector.load %arg7[%c0_32, %c0_33] : memref<2x4xf32, #tpu.memory_space<vmem>>, vector<2x4xf32>
    tpu.vector_store %arg7[%c0_32, %c0_33], %45 {strides = array<i32>} : memref<2x4xf32, #tpu.memory_space<vmem>>, vector<2x4xf32>,
    return
  }
  func.func @transform_0(%arg0: i32) -> (i32, i32) {
    %c0_i32 = arith.constant 0 : i32
    %c0_i32_0 = arith.constant 0 : i32
    %c0_i32_1 = arith.constant 0 : i32
    return %c0_i32, %c0_i32_0 : i32, i32
  }
  func.func @transform_1(%arg0: i32) -> (i32, i32) {
    %c0_i32 = arith.constant 0 : i32
    %c0_i32_0 = arith.constant 0 : i32
    %c0_i32_1 = arith.constant 0 : i32
    return %c0_i32, %c0_i32_0 : i32, i32
  }
  func.func @transform_2(%arg0: i32) -> (i32, i32) {
    %c0_i32 = arith.constant 0 : i32
    %c0_i32_0 = arith.constant 0 : i32
    %c0_i32_1 = arith.constant 0 : i32
    return %c0_i32, %c0_i32_0 : i32, i32
  }
  func.func @transform_3(%arg0: i32) -> (i32, i32) {
    %c0_i32 = arith.constant 0 : i32
    %c0_i32_0 = arith.constant 0 : i32
    %c0_i32_1 = arith.constant 0 : i32
    return %c0_i32, %c0_i32_0 : i32, i32
  }
  func.func @transform_4(%arg0: i32) -> (i32, i32) {
    %c0_i32 = arith.constant 0 : i32
    %c0_i32_0 = arith.constant 0 : i32
    %c0_i32_1 = arith.constant 0 : i32
    return %c0_i32, %c0_i32_0 : i32, i32
  }
  func.func @transform_5(%arg0: i32) -> (i32, i32) {
    %c0_i32 = arith.constant 0 : i32
    %c0_i32_0 = arith.constant 0 : i32
    %c0_i32_1 = arith.constant 0 : i32
    return %c0_i32, %c0_i32_0 : i32, i32
  }
  func.func @transform_6(%arg0: i32) -> (i32, i32) {
    %c0_i32 = arith.constant 0 : i32
    %c0_i32_0 = arith.constant 0 : i32
    %c0_i32_1 = arith.constant 0 : i32
    return %c0_i32, %c0_i32_0 : i32, i32
  }
}

</mosaic_0001>

<llo_original>
// kernel: tpu_custom_call.1
$region0: #{tpu_custom_call.1}
  #allocation0 [shape = 'u32[]', space=smem, size = 0x4, offset = 0x4, fixed_abs, tag = 'smem constant byte address 0x4 - core index']
  #allocation1 [shape = 'u32[144,128]{1,0:T(1,128)}', space=vmem, size = 0x12000, scoped, tag = 'internal scratch']
  #allocation2 [shape = 'f32[16,32]{1,0:T(8,128)}', space=vmem, size = 0x2000, scoped, tag = 'scratch operand']
  %s0 = inlined_call_operand.vmem [shape: f32[16,4], index: 0, kind: input, shape index: {}]
  %s1 = inlined_call_operand.vmem [shape: f32[4,32], index: 1, kind: input, shape index: {}]
  %s2 = inlined_call_operand.vmem [shape: f32[32,32], index: 2, kind: input, shape index: {}]
  %s3 = inlined_call_operand.vmem [shape: f32[1,32], index: 3, kind: input, shape index: {}]
  %s4 = inlined_call_operand.vmem [shape: f32[32,4], index: 4, kind: input, shape index: {}]
  %s5 = inlined_call_operand.vmem [shape: f32[1,4], index: 5, kind: input, shape index: {}]
  %s6 = inlined_call_operand.hbm [shape: f32[2,4], index: 6, kind: output, shape index: {}]
  %s7 = sld [smem:[#allocation0]]
  $region34: #{tpu_custom_call.1} parent=0
    _
  %s9 = ssub.s32 1, %s7
  %s10 = scalar_select 0, %s9, %s7
  $region1: #{tpu_custom_call.1} parent=0
    #allocation3 [shape = 'u8[1024]{0}', space=vmem, size = 0x400, scoped, tag = 'output window, operand 0, single buffered']
    #allocation4 [shape = 's32[1]{0}', space=sflag, size = 0x4, scoped, tag = 'scoped memory for tpu_custom_call.1']
    %11 = vsyncpa [#allocation4], 0
    // Predicated region
    $region2: #{tpu_custom_call.1} parent=1 // pred_check
      _
    $region3: #{tpu_custom_call.1} parent=1 // pred_check_branch
      %13 = sbr.rel (0) target = $region5
    $region4: #{tpu_custom_call.1} parent=1 // pred_region
      _
    $region5: #{tpu_custom_call.1} parent=1 // pred_fallthru
      _
    // Predicated region
    $region6: #{tpu_custom_call.1} parent=1 // pred_check
      _
    $region7: #{tpu_custom_call.1} parent=1 // pred_check_branch
      %15 = sbr.rel (0) target = $region9
    $region8: #{tpu_custom_call.1} parent=1 // pred_region
      _
    $region9: #{tpu_custom_call.1} parent=1 // pred_fallthru
      _
    // Predicated region
    $region10: #{tpu_custom_call.1} parent=1 // pred_check
      _
    $region11: #{tpu_custom_call.1} parent=1 // pred_check_branch
      %17 = sbr.rel (0) target = $region13
    $region12: #{tpu_custom_call.1} parent=1 // pred_region
      _
    $region13: #{tpu_custom_call.1} parent=1 // pred_fallthru
      _
    // Predicated region
    $region14: #{tpu_custom_call.1} parent=1 // pred_check
      _
    $region15: #{tpu_custom_call.1} parent=1 // pred_check_branch
      %19 = sbr.rel (0) target = $region17
    $region16: #{tpu_custom_call.1} parent=1 // pred_region
      _
    $region17: #{tpu_custom_call.1} parent=1 // pred_fallthru
      _
    // Predicated region
    $region18: #{tpu_custom_call.1} parent=1 // pred_check
      _
    $region19: #{tpu_custom_call.1} parent=1 // pred_check_branch
      %21 = sbr.rel (0) target = $region21
    $region20: #{tpu_custom_call.1} parent=1 // pred_region
      _
    $region21: #{tpu_custom_call.1} parent=1 // pred_fallthru
      _
    // Predicated region
    $region22: #{tpu_custom_call.1} parent=1 // pred_check
      _
    $region23: #{tpu_custom_call.1} parent=1 // pred_check_branch
      %23 = sbr.rel (0) target = $region25
    $region24: #{tpu_custom_call.1} parent=1 // pred_region
      _
    $region25: #{tpu_custom_call.1} parent=1 // pred_fallthru
      _
    %v24 = vld [vmem:[%s0] sm:$0xff]
    %v25 = vld [vmem:[%s0 + $0x8] sm:$0xff]
    %v26 = vld [vmem:[%s1] sm:$0xf]
    %v27 = vld [vmem:[%s3] sm:$0x1]
    %v29 = vlaneseq
    %v30 = vshrl.u32 %v29, 7
    %v31 = vsub.s32 0, %v30
    %v32 = vrot.slane %v27, %v31
    %vm34 = vcmask 31744
    %v36 = vsel %vm34, %v24, 0
    %v39 = vsel %vm34, %v25, 0
    %vm41 = vcmask 1043456
    %v43 = vsel %vm41, %v26, 0
    %45 = vmatprep.subr.mxu0 0.0
    %46 = vmatpush1.msra.mxu0 %v43
    %47 = vmatprep.subr.mxu0 0.0
    %48 = vmatpush1.msra.mxu0 0.0
    %49 = vmatprep.subr.mxu0 0.0
    %50 = vmatpush1.msra.mxu0 0.0
    %51 = vmatprep.subr.mxu0 0.0
    %52 = vmatpush1.msra.mxu0 0.0
    %53 = vmatprep.subr.mxu0 0.0
    %54 = vmatpush1.msra.mxu0 0.0
    %55 = vmatprep.subr.mxu0 0.0
    %56 = vmatpush1.msra.mxu0 0.0
    %57 = vmatprep.subr.mxu0 0.0
    %58 = vmatpush1.msra.mxu0 0.0
    %59 = vmatprep.subr.mxu0 0.0
    %60 = vmatpush1.msra.mxu0 0.0
    %61 = vmatprep.subr.mxu0 0.0
    %62 = vmatpush1.msra.mxu0 0.0
    %63 = vmatprep.subr.mxu0 0.0
    %64 = vmatpush1.msra.mxu0 0.0
    %65 = vmatprep.subr.mxu0 0.0
    %66 = vmatpush1.msra.mxu0 0.0
    %67 = vmatprep.subr.mxu0 0.0
    %68 = vmatpush1.msra.mxu0 0.0
    %69 = vmatprep.subr.mxu0 0.0
    %70 = vmatpush1.msra.mxu0 0.0
    %71 = vmatprep.subr.mxu0 0.0
    %72 = vmatpush1.msra.mxu0 0.0
    %73 = vmatprep.subr.mxu0 0.0
    %74 = vmatpush1.msra.mxu0 0.0
    %75 = vmatprep.subr.mxu0 0.0
    %76 = vmatpush1.msra.mxu0 0.0
    %77 = vmatprep.subr.mxu0 0.0
    %78 = vmatpush1.msra.mxu0 0.0
    %79 = vmatprep.subr.mxu0 0.0
    %80 = vmatpush1.msra.mxu0 0.0
    %81 = vmatprep.subr.mxu0 0.0
    %82 = vmatpush1.msra.mxu0 0.0
    %83 = vmatprep.subr.mxu0 0.0
    %84 = vmatpush1.msra.mxu0 0.0
    %85 = vmatprep.subr.mxu0 0.0
    %86 = vmatpush1.msra.mxu0 0.0
    %87 = vmatprep.subr.mxu0 0.0
    %88 = vmatpush1.msra.mxu0 0.0
    %89 = vmatprep.subr.mxu0 0.0
    %90 = vmatpush1.msra.mxu0 0.0
    %91 = vmatprep.subr.mxu0 0.0
    %92 = vmatpush1.msra.mxu0 0.0
    %93 = vmatprep.subr.mxu0 0.0
    %94 = vmatpush1.msra.mxu0 0.0
    %95 = vmatprep.subr.mxu0 0.0
    %96 = vmatpush1.msra.mxu0 0.0
    %97 = vmatprep.subr.mxu0 0.0
    %98 = vmatpush1.msra.mxu0 0.0
    %99 = vmatprep.subr.mxu0 0.0
    %100 = vmatpush1.msra.mxu0 0.0
    %101 = vmatprep.subr.mxu0 0.0
    %102 = vmatpush1.msra.mxu0 0.0
    %103 = vmatprep.subr.mxu0 0.0
    %104 = vmatpush1.msra.mxu0 0.0
    %105 = vmatprep.subr.mxu0 0.0
    %106 = vmatpush1.msra.mxu0 0.0
    %107 = vmatprep.subr.mxu0 0.0
    %108 = vmatpush1.msra.mxu0 0.0
    %109 = vmatprep.mubr.f32.mxu0 0.0
    %110 = vmatmul.mubr.f32.gmra.mrb[0].mxu0 %v36
    %v111 = vpop.f32.mrb[0].mxu0
    %v112 = vadd.f32 %v32, %v111
    %v113 = vpop.f32.mrb[0].mxu0
    %114 = vmatprep.mubr.f32.mxu0 0.0
    %115 = vmatmul.mubr.f32.gmra.mrb[0].mxu0 %v39
    %v116 = vpop.f32.mrb[0].mxu0
    %v117 = vadd.f32 %v32, %v116
    %v118 = vpop.f32.mrb[0].mxu0
    %119 = vdwg.mxu0
    %vm120 = vcmask 261120
    %121 = vst.msk [vmem:[#allocation2] sm:$0xff] %vm120, %v112
    %122 = vst.msk [vmem:[#allocation2 + $0x8] sm:$0xff] %vm120, %v117
    %v123 = vld [vmem:[%s2] sm:$0xff]
    %v124 = vld [vmem:[%s2 + $0x8] sm:$0xff]
    %v125 = vld [vmem:[%s2 + $0x10] sm:$0xff]
    %v126 = vld [vmem:[%s2 + $0x18] sm:$0xff]
    %v127 = vld [vmem:[#allocation2] sm:$0x3]
    %v129 = vsel %vm120, 0.0, 0
    %131 = vmatprep.subr.mxu0 0.0
    %132 = vmatpush1.msra.mxu0 %v123
    %133 = vmatprep.subr.mxu0 0.0
    %134 = vmatpush1.msra.mxu0 %v124
    %135 = vmatprep.subr.mxu0 0.0
    %136 = vmatpush1.msra.mxu0 %v125
    %137 = vmatprep.subr.mxu0 0.0
    %138 = vmatpush1.msra.mxu0 %v126
    %139 = vmatprep.subr.mxu0 0.0
    %140 = vmatpush1.msra.mxu0 0.0
    %141 = vmatprep.subr.mxu0 0.0
    %142 = vmatpush1.msra.mxu0 0.0
    %143 = vmatprep.subr.mxu0 0.0
    %144 = vmatpush1.msra.mxu0 0.0
    %145 = vmatprep.subr.mxu0 0.0
    %146 = vmatpush1.msra.mxu0 0.0
    %147 = vmatprep.subr.mxu0 0.0
    %148 = vmatpush1.msra.mxu0 0.0
    %149 = vmatprep.subr.mxu0 0.0
    %150 = vmatpush1.msra.mxu0 0.0
    %151 = vmatprep.subr.mxu0 0.0
    %152 = vmatpush1.msra.mxu0 0.0
    %153 = vmatprep.subr.mxu0 0.0
    %154 = vmatpush1.msra.mxu0 0.0
    %155 = vmatprep.subr.mxu0 0.0
    %156 = vmatpush1.msra.mxu0 0.0
    %157 = vmatprep.subr.mxu0 0.0
    %158 = vmatpush1.msra.mxu0 0.0
    %159 = vmatprep.subr.mxu0 0.0
    %160 = vmatpush1.msra.mxu0 0.0
    %161 = vmatprep.subr.mxu0 0.0
    %162 = vmatpush1.msra.mxu0 0.0
    %163 = vmatprep.subr.mxu0 0.0
    %164 = vmatpush1.msra.mxu0 0.0
    %165 = vmatprep.subr.mxu0 0.0
    %166 = vmatpush1.msra.mxu0 0.0
    %167 = vmatprep.subr.mxu0 0.0
    %168 = vmatpush1.msra.mxu0 0.0
    %169 = vmatprep.subr.mxu0 0.0
    %170 = vmatpush1.msra.mxu0 0.0
    %171 = vmatprep.subr.mxu0 0.0
    %172 = vmatpush1.msra.mxu0 0.0
    %173 = vmatprep.subr.mxu0 0.0
    %174 = vmatpush1.msra.mxu0 0.0
    %175 = vmatprep.subr.mxu0 0.0
    %176 = vmatpush1.msra.mxu0 0.0
    %177 = vmatprep.subr.mxu0 0.0
    %178 = vmatpush1.msra.mxu0 0.0
    %179 = vmatprep.subr.mxu0 0.0
    %180 = vmatpush1.msra.mxu0 0.0
    %181 = vmatprep.subr.mxu0 0.0
    %182 = vmatpush1.msra.mxu0 0.0
    %183 = vmatprep.subr.mxu0 0.0
    %184 = vmatpush1.msra.mxu0 0.0
    %185 = vmatprep.subr.mxu0 0.0
    %186 = vmatpush1.msra.mxu0 0.0
    %187 = vmatprep.subr.mxu0 0.0
    %188 = vmatpush1.msra.mxu0 0.0
    %189 = vmatprep.subr.mxu0 0.0
    %190 = vmatpush1.msra.mxu0 0.0
    %191 = vmatprep.subr.mxu0 0.0
    %192 = vmatpush1.msra.mxu0 0.0
    %193 = vmatprep.subr.mxu0 0.0
    %194 = vmatpush1.msra.mxu0 0.0
    %195 = vmatprep.mubr.f32.mxu0 0.0
    %196 = vmatmul.mubr.f32.gmra.mrb[0].mxu0 %v129
    %v197 = vpop.f32.mrb[0].mxu0
    %v198 = vadd.f32 0.0, %v197
    %v199 = vpop.f32.mrb[0].mxu0
    %200 = vdwg.mxu0
    %v201 = vadd.f32 %v127, %v198
    %v202 = vtanh.pop %v201
    %v203 = vld [vmem:[#allocation2 + $0x2] sm:$0x3]
    %v205 = vsel %vm120, %v202, 0
    %207 = vmatprep.subr.mxu0 0.0
    %208 = vmatpush1.msra.mxu0 %v123
    %209 = vmatprep.subr.mxu0 0.0
    %210 = vmatpush1.msra.mxu0 %v124
    %211 = vmatprep.subr.mxu0 0.0
    %212 = vmatpush1.msra.mxu0 %v125
    %213 = vmatprep.subr.mxu0 0.0
    %214 = vmatpush1.msra.mxu0 %v126
    %215 = vmatprep.subr.mxu0 0.0
    %216 = vmatpush1.msra.mxu0 0.0
    %217 = vmatprep.subr.mxu0 0.0
    %218 = vmatpush1.msra.mxu0 0.0
    %219 = vmatprep.subr.mxu0 0.0
    %220 = vmatpush1.msra.mxu0 0.0
    %221 = vmatprep.subr.mxu0 0.0
    %222 = vmatpush1.msra.mxu0 0.0
    %223 = vmatprep.subr.mxu0 0.0
    %224 = vmatpush1.msra.mxu0 0.0
    %225 = vmatprep.subr.mxu0 0.0
    %226 = vmatpush1.msra.mxu0 0.0
    %227 = vmatprep.subr.mxu0 0.0
    %228 = vmatpush1.msra.mxu0 0.0
    %229 = vmatprep.subr.mxu0 0.0
    %230 = vmatpush1.msra.mxu0 0.0
    %231 = vmatprep.subr.mxu0 0.0
    %232 = vmatpush1.msra.mxu0 0.0
    %233 = vmatprep.subr.mxu0 0.0
    %234 = vmatpush1.msra.mxu0 0.0
    %235 = vmatprep.subr.mxu0 0.0
    %236 = vmatpush1.msra.mxu0 0.0
    %237 = vmatprep.subr.mxu0 0.0
    %238 = vmatpush1.msra.mxu0 0.0
    %239 = vmatprep.subr.mxu0 0.0
    %240 = vmatpush1.msra.mxu0 0.0
    %241 = vmatprep.subr.mxu0 0.0
    %242 = vmatpush1.msra.mxu0 0.0
    %243 = vmatprep.subr.mxu0 0.0
    %244 = vmatpush1.msra.mxu0 0.0
    %245 = vmatprep.subr.mxu0 0.0
    %246 = vmatpush1.msra.mxu0 0.0
    %247 = vmatprep.subr.mxu0 0.0
    %248 = vmatpush1.msra.mxu0 0.0
    %249 = vmatprep.subr.mxu0 0.0
    %250 = vmatpush1.msra.mxu0 0.0
    %251 = vmatprep.subr.mxu0 0.0
    %252 = vmatpush1.msra.mxu0 0.0
    %253 = vmatprep.subr.mxu0 0.0
    %254 = vmatpush1.msra.mxu0 0.0
    %255 = vmatprep.subr.mxu0 0.0
    %256 = vmatpush1.msra.mxu0 0.0
    %257 = vmatprep.subr.mxu0 0.0
    %258 = vmatpush1.msra.mxu0 0.0
    %259 = vmatprep.subr.mxu0 0.0
    %260 = vmatpush1.msra.mxu0 0.0
    %261 = vmatprep.subr.mxu0 0.0
    %262 = vmatpush1.msra.mxu0 0.0
    %263 = vmatprep.subr.mxu0 0.0
    %264 = vmatpush1.msra.mxu0 0.0
    %265 = vmatprep.subr.mxu0 0.0
    %266 = vmatpush1.msra.mxu0 0.0
    %267 = vmatprep.subr.mxu0 0.0
    %268 = vmatpush1.msra.mxu0 0.0
    %269 = vmatprep.subr.mxu0 0.0
    %270 = vmatpush1.msra.mxu0 0.0
    %271 = vmatprep.mubr.f32.mxu0 0.0
    %272 = vmatmul.mubr.f32.gmra.mrb[0].mxu0 %v205
    %v273 = vpop.f32.mrb[0].mxu0
    %v274 = vadd.f32 0.0, %v273
    %v275 = vpop.f32.mrb[0].mxu0
    %276 = vdwg.mxu0
    %v277 = vadd.f32 %v203, %v274
    %v278 = vtanh.pop %v277
    %v279 = vld [vmem:[#allocation2 + $0x4] sm:$0x3]
    %v281 = vsel %vm120, %v278, 0
    %283 = vmatprep.subr.mxu0 0.0
    %284 = vmatpush1.msra.mxu0 %v123
    %285 = vmatprep.subr.mxu0 0.0
    %286 = vmatpush1.msra.mxu0 %v124
    %287 = vmatprep.subr.mxu0 0.0
    %288 = vmatpush1.msra.mxu0 %v125
    %289 = vmatprep.subr.mxu0 0.0
    %290 = vmatpush1.msra.mxu0 %v126
    %291 = vmatprep.subr.mxu0 0.0
    %292 = vmatpush1.msra.mxu0 0.0
    %293 = vmatprep.subr.mxu0 0.0
    %294 = vmatpush1.msra.mxu0 0.0
    %295 = vmatprep.subr.mxu0 0.0
    %296 = vmatpush1.msra.mxu0 0.0
    %297 = vmatprep.subr.mxu0 0.0
    %298 = vmatpush1.msra.mxu0 0.0
    %299 = vmatprep.subr.mxu0 0.0
    %300 = vmatpush1.msra.mxu0 0.0
    %301 = vmatprep.subr.mxu0 0.0
    %302 = vmatpush1.msra.mxu0 0.0
    %303 = vmatprep.subr.mxu0 0.0
    %304 = vmatpush1.msra.mxu0 0.0
    %305 = vmatprep.subr.mxu0 0.0
    %306 = vmatpush1.msra.mxu0 0.0
    %307 = vmatprep.subr.mxu0 0.0
    %308 = vmatpush1.msra.mxu0 0.0
    %309 = vmatprep.subr.mxu0 0.0
    %310 = vmatpush1.msra.mxu0 0.0
    %311 = vmatprep.subr.mxu0 0.0
    %312 = vmatpush1.msra.mxu0 0.0
    %313 = vmatprep.subr.mxu0 0.0
    %314 = vmatpush1.msra.mxu0 0.0
    %315 = vmatprep.subr.mxu0 0.0
    %316 = vmatpush1.msra.mxu0 0.0
    %317 = vmatprep.subr.mxu0 0.0
    %318 = vmatpush1.msra.mxu0 0.0
    %319 = vmatprep.subr.mxu0 0.0
    %320 = vmatpush1.msra.mxu0 0.0
    %321 = vmatprep.subr.mxu0 0.0
    %322 = vmatpush1.msra.mxu0 0.0
    %323 = vmatprep.subr.mxu0 0.0
    %324 = vmatpush1.msra.mxu0 0.0
    %325 = vmatprep.subr.mxu0 0.0
    %326 = vmatpush1.msra.mxu0 0.0
    %327 = vmatprep.subr.mxu0 0.0
    %328 = vmatpush1.msra.mxu0 0.0
    %329 = vmatprep.subr.mxu0 0.0
    %330 = vmatpush1.msra.mxu0 0.0
    %331 = vmatprep.subr.mxu0 0.0
    %332 = vmatpush1.msra.mxu0 0.0
    %333 = vmatprep.subr.mxu0 0.0
    %334 = vmatpush1.msra.mxu0 0.0
    %335 = vmatprep.subr.mxu0 0.0
    %336 = vmatpush1.msra.mxu0 0.0
    %337 = vmatprep.subr.mxu0 0.0
    %338 = vmatpush1.msra.mxu0 0.0
    %339 = vmatprep.subr.mxu0 0.0
    %340 = vmatpush1.msra.mxu0 0.0
    %341 = vmatprep.subr.mxu0 0.0
    %342 = vmatpush1.msra.mxu0 0.0
    %343 = vmatprep.subr.mxu0 0.0
    %344 = vmatpush1.msra.mxu0 0.0
    %345 = vmatprep.subr.mxu0 0.0
    %346 = vmatpush1.msra.mxu0 0.0
    %347 = vmatprep.mubr.f32.mxu0 0.0
    %348 = vmatmul.mubr.f32.gmra.mrb[0].mxu0 %v281
    %v349 = vpop.f32.mrb[0].mxu0
    %v350 = vadd.f32 0.0, %v349
    %v351 = vpop.f32.mrb[0].mxu0
    %352 = vdwg.mxu0
    %v353 = vadd.f32 %v279, %v350
    %v354 = vtanh.pop %v353
    %v355 = vld [vmem:[#allocation2 + $0x6] sm:$0x3]
    %v357 = vsel %vm120, %v354, 0
    %359 = vmatprep.subr.mxu0 0.0
    %360 = vmatpush1.msra.mxu0 %v123
    %361 = vmatprep.subr.mxu0 0.0
    %362 = vmatpush1.msra.mxu0 %v124
    %363 = vmatprep.subr.mxu0 0.0
    %364 = vmatpush1.msra.mxu0 %v125
    %365 = vmatprep.subr.mxu0 0.0
    %366 = vmatpush1.msra.mxu0 %v126
    %367 = vmatprep.subr.mxu0 0.0
    %368 = vmatpush1.msra.mxu0 0.0
    %369 = vmatprep.subr.mxu0 0.0
    %370 = vmatpush1.msra.mxu0 0.0
    %371 = vmatprep.subr.mxu0 0.0
    %372 = vmatpush1.msra.mxu0 0.0
    %373 = vmatprep.subr.mxu0 0.0
    %374 = vmatpush1.msra.mxu0 0.0
    %375 = vmatprep.subr.mxu0 0.0
    %376 = vmatpush1.msra.mxu0 0.0
    %377 = vmatprep.subr.mxu0 0.0
    %378 = vmatpush1.msra.mxu0 0.0
    %379 = vmatprep.subr.mxu0 0.0
    %380 = vmatpush1.msra.mxu0 0.0
    %381 = vmatprep.subr.mxu0 0.0
    %382 = vmatpush1.msra.mxu0 0.0
    %383 = vmatprep.subr.mxu0 0.0
    %384 = vmatpush1.msra.mxu0 0.0
    %385 = vmatprep.subr.mxu0 0.0
    %386 = vmatpush1.msra.mxu0 0.0
    %387 = vmatprep.subr.mxu0 0.0
    %388 = vmatpush1.msra.mxu0 0.0
    %389 = vmatprep.subr.mxu0 0.0
    %390 = vmatpush1.msra.mxu0 0.0
    %391 = vmatprep.subr.mxu0 0.0
    %392 = vmatpush1.msra.mxu0 0.0
    %393 = vmatprep.subr.mxu0 0.0
    %394 = vmatpush1.msra.mxu0 0.0
    %395 = vmatprep.subr.mxu0 0.0
    %396 = vmatpush1.msra.mxu0 0.0
    %397 = vmatprep.subr.mxu0 0.0
    %398 = vmatpush1.msra.mxu0 0.0
    %399 = vmatprep.subr.mxu0 0.0
    %400 = vmatpush1.msra.mxu0 0.0
    %401 = vmatprep.subr.mxu0 0.0
    %402 = vmatpush1.msra.mxu0 0.0
    %403 = vmatprep.subr.mxu0 0.0
    %404 = vmatpush1.msra.mxu0 0.0
    %405 = vmatprep.subr.mxu0 0.0
    %406 = vmatpush1.msra.mxu0 0.0
    %407 = vmatprep.subr.mxu0 0.0
    %408 = vmatpush1.msra.mxu0 0.0
    %409 = vmatprep.subr.mxu0 0.0
    %410 = vmatpush1.msra.mxu0 0.0
    %411 = vmatprep.subr.mxu0 0.0
    %412 = vmatpush1.msra.mxu0 0.0
    %413 = vmatprep.subr.mxu0 0.0
    %414 = vmatpush1.msra.mxu0 0.0
    %415 = vmatprep.subr.mxu0 0.0
    %416 = vmatpush1.msra.mxu0 0.0
    %417 = vmatprep.subr.mxu0 0.0
    %418 = vmatpush1.msra.mxu0 0.0
    %419 = vmatprep.subr.mxu0 0.0
    %420 = vmatpush1.msra.mxu0 0.0
    %421 = vmatprep.subr.mxu0 0.0
    %422 = vmatpush1.msra.mxu0 0.0
    %423 = vmatprep.mubr.f32.mxu0 0.0
    %424 = vmatmul.mubr.f32.gmra.mrb[0].mxu0 %v357
    %v425 = vpop.f32.mrb[0].mxu0
    %v426 = vadd.f32 0.0, %v425
    %v427 = vpop.f32.mrb[0].mxu0
    %428 = vdwg.mxu0
    %v429 = vadd.f32 %v355, %v426
    %v430 = vtanh.pop %v429
    %v431 = vld [vmem:[#allocation2 + $0x8] sm:$0x3]
    %v433 = vsel %vm120, %v430, 0
    %435 = vmatprep.subr.mxu0 0.0
    %436 = vmatpush1.msra.mxu0 %v123
    %437 = vmatprep.subr.mxu0 0.0
    %438 = vmatpush1.msra.mxu0 %v124
    %439 = vmatprep.subr.mxu0 0.0
    %440 = vmatpush1.msra.mxu0 %v125
    %441 = vmatprep.subr.mxu0 0.0
    %442 = vmatpush1.msra.mxu0 %v126
    %443 = vmatprep.subr.mxu0 0.0
    %444 = vmatpush1.msra.mxu0 0.0
    %445 = vmatprep.subr.mxu0 0.0
    %446 = vmatpush1.msra.mxu0 0.0
    %447 = vmatprep.subr.mxu0 0.0
    %448 = vmatpush1.msra.mxu0 0.0
    %449 = vmatprep.subr.mxu0 0.0
    %450 = vmatpush1.msra.mxu0 0.0
    %451 = vmatprep.subr.mxu0 0.0
    %452 = vmatpush1.msra.mxu0 0.0
    %453 = vmatprep.subr.mxu0 0.0
    %454 = vmatpush1.msra.mxu0 0.0
    %455 = vmatprep.subr.mxu0 0.0
    %456 = vmatpush1.msra.mxu0 0.0
    %457 = vmatprep.subr.mxu0 0.0
    %458 = vmatpush1.msra.mxu0 0.0
    %459 = vmatprep.subr.mxu0 0.0
    %460 = vmatpush1.msra.mxu0 0.0
    %461 = vmatprep.subr.mxu0 0.0
    %462 = vmatpush1.msra.mxu0 0.0
    %463 = vmatprep.subr.mxu0 0.0
    %464 = vmatpush1.msra.mxu0 0.0
    %465 = vmatprep.subr.mxu0 0.0
    %466 = vmatpush1.msra.mxu0 0.0
    %467 = vmatprep.subr.mxu0 0.0
    %468 = vmatpush1.msra.mxu0 0.0
    %469 = vmatprep.subr.mxu0 0.0
    %470 = vmatpush1.msra.mxu0 0.0
    %471 = vmatprep.subr.mxu0 0.0
    %472 = vmatpush1.msra.mxu0 0.0
    %473 = vmatprep.subr.mxu0 0.0
    %474 = vmatpush1.msra.mxu0 0.0
    %475 = vmatprep.subr.mxu0 0.0
    %476 = vmatpush1.msra.mxu0 0.0
    %477 = vmatprep.subr.mxu0 0.0
    %478 = vmatpush1.msra.mxu0 0.0
    %479 = vmatprep.subr.mxu0 0.0
    %480 = vmatpush1.msra.mxu0 0.0
    %481 = vmatprep.subr.mxu0 0.0
    %482 = vmatpush1.msra.mxu0 0.0
    %483 = vmatprep.subr.mxu0 0.0
    %484 = vmatpush1.msra.mxu0 0.0
    %485 = vmatprep.subr.mxu0 0.0
    %486 = vmatpush1.msra.mxu0 0.0
    %487 = vmatprep.subr.mxu0 0.0
    %488 = vmatpush1.msra.mxu0 0.0
    %489 = vmatprep.subr.mxu0 0.0
    %490 = vmatpush1.msra.mxu0 0.0
    %491 = vmatprep.subr.mxu0 0.0
    %492 = vmatpush1.msra.mxu0 0.0
    %493 = vmatprep.subr.mxu0 0.0
    %494 = vmatpush1.msra.mxu0 0.0
    %495 = vmatprep.subr.mxu0 0.0
    %496 = vmatpush1.msra.mxu0 0.0
    %497 = vmatprep.subr.mxu0 0.0
    %498 = vmatpush1.msra.mxu0 0.0
    %499 = vmatprep.mubr.f32.mxu0 0.0
    %500 = vmatmul.mubr.f32.gmra.mrb[0].mxu0 %v433
    %v501 = vpop.f32.mrb[0].mxu0
    %v502 = vadd.f32 0.0, %v501
    %v503 = vpop.f32.mrb[0].mxu0
    %504 = vdwg.mxu0
    %v505 = vadd.f32 %v431, %v502
    %v506 = vtanh.pop %v505
    %v507 = vld [vmem:[#allocation2 + $0xa] sm:$0x3]
    %v509 = vsel %vm120, %v506, 0
    %511 = vmatprep.subr.mxu0 0.0
    %512 = vmatpush1.msra.mxu0 %v123
    %513 = vmatprep.subr.mxu0 0.0
    %514 = vmatpush1.msra.mxu0 %v124
    %515 = vmatprep.subr.mxu0 0.0
    %516 = vmatpush1.msra.mxu0 %v125
    %517 = vmatprep.subr.mxu0 0.0
    %518 = vmatpush1.msra.mxu0 %v126
    %519 = vmatprep.subr.mxu0 0.0
    %520 = vmatpush1.msra.mxu0 0.0
    %521 = vmatprep.subr.mxu0 0.0
    %522 = vmatpush1.msra.mxu0 0.0
    %523 = vmatprep.subr.mxu0 0.0
    %524 = vmatpush1.msra.mxu0 0.0
    %525 = vmatprep.subr.mxu0 0.0
    %526 = vmatpush1.msra.mxu0 0.0
    %527 = vmatprep.subr.mxu0 0.0
    %528 = vmatpush1.msra.mxu0 0.0
    %529 = vmatprep.subr.mxu0 0.0
    %530 = vmatpush1.msra.mxu0 0.0
    %531 = vmatprep.subr.mxu0 0.0
    %532 = vmatpush1.msra.mxu0 0.0
    %533 = vmatprep.subr.mxu0 0.0
    %534 = vmatpush1.msra.mxu0 0.0
    %535 = vmatprep.subr.mxu0 0.0
    %536 = vmatpush1.msra.mxu0 0.0
    %537 = vmatprep.subr.mxu0 0.0
    %538 = vmatpush1.msra.mxu0 0.0
    %539 = vmatprep.subr.mxu0 0.0
    %540 = vmatpush1.msra.mxu0 0.0
    %541 = vmatprep.subr.mxu0 0.0
    %542 = vmatpush1.msra.mxu0 0.0
    %543 = vmatprep.subr.mxu0 0.0
    %544 = vmatpush1.msra.mxu0 0.0
    %545 = vmatprep.subr.mxu0 0.0
    %546 = vmatpush1.msra.mxu0 0.0
    %547 = vmatprep.subr.mxu0 0.0
    %548 = vmatpush1.msra.mxu0 0.0
    %549 = vmatprep.subr.mxu0 0.0
    %550 = vmatpush1.msra.mxu0 0.0
    %551 = vmatprep.subr.mxu0 0.0
    %552 = vmatpush1.msra.mxu0 0.0
    %553 = vmatprep.subr.mxu0 0.0
    %554 = vmatpush1.msra.mxu0 0.0
    %555 = vmatprep.subr.mxu0 0.0
    %556 = vmatpush1.msra.mxu0 0.0
    %557 = vmatprep.subr.mxu0 0.0
    %558 = vmatpush1.msra.mxu0 0.0
    %559 = vmatprep.subr.mxu0 0.0
    %560 = vmatpush1.msra.mxu0 0.0
    %561 = vmatprep.subr.mxu0 0.0
    %562 = vmatpush1.msra.mxu0 0.0
    %563 = vmatprep.subr.mxu0 0.0
    %564 = vmatpush1.msra.mxu0 0.0
    %565 = vmatprep.subr.mxu0 0.0
    %566 = vmatpush1.msra.mxu0 0.0
    %567 = vmatprep.subr.mxu0 0.0
    %568 = vmatpush1.msra.mxu0 0.0
    %569 = vmatprep.subr.mxu0 0.0
    %570 = vmatpush1.msra.mxu0 0.0
    %571 = vmatprep.subr.mxu0 0.0
    %572 = vmatpush1.msra.mxu0 0.0
    %573 = vmatprep.subr.mxu0 0.0
    %574 = vmatpush1.msra.mxu0 0.0
    %575 = vmatprep.mubr.f32.mxu0 0.0
    %576 = vmatmul.mubr.f32.gmra.mrb[0].mxu0 %v509
    %v577 = vpop.f32.mrb[0].mxu0
    %v578 = vadd.f32 0.0, %v577
    %v579 = vpop.f32.mrb[0].mxu0
    %580 = vdwg.mxu0
    %v581 = vadd.f32 %v507, %v578
    %v582 = vtanh.pop %v581
    %v583 = vld [vmem:[#allocation2 + $0xc] sm:$0x3]
    %v585 = vsel %vm120, %v582, 0
    %587 = vmatprep.subr.mxu0 0.0
    %588 = vmatpush1.msra.mxu0 %v123
    %589 = vmatprep.subr.mxu0 0.0
    %590 = vmatpush1.msra.mxu0 %v124
    %591 = vmatprep.subr.mxu0 0.0
    %592 = vmatpush1.msra.mxu0 %v125
    %593 = vmatprep.subr.mxu0 0.0
    %594 = vmatpush1.msra.mxu0 %v126
    %595 = vmatprep.subr.mxu0 0.0
    %596 = vmatpush1.msra.mxu0 0.0
    %597 = vmatprep.subr.mxu0 0.0
    %598 = vmatpush1.msra.mxu0 0.0
    %599 = vmatprep.subr.mxu0 0.0
    %600 = vmatpush1.msra.mxu0 0.0
    %601 = vmatprep.subr.mxu0 0.0
    %602 = vmatpush1.msra.mxu0 0.0
    %603 = vmatprep.subr.mxu0 0.0
    %604 = vmatpush1.msra.mxu0 0.0
    %605 = vmatprep.subr.mxu0 0.0
    %606 = vmatpush1.msra.mxu0 0.0
    %607 = vmatprep.subr.mxu0 0.0
    %608 = vmatpush1.msra.mxu0 0.0
    %609 = vmatprep.subr.mxu0 0.0
    %610 = vmatpush1.msra.mxu0 0.0
    %611 = vmatprep.subr.mxu0 0.0
    %612 = vmatpush1.msra.mxu0 0.0
    %613 = vmatprep.subr.mxu0 0.0
    %614 = vmatpush1.msra.mxu0 0.0
    %615 = vmatprep.subr.mxu0 0.0
    %616 = vmatpush1.msra.mxu0 0.0
    %617 = vmatprep.subr.mxu0 0.0
    %618 = vmatpush1.msra.mxu0 0.0
    %619 = vmatprep.subr.mxu0 0.0
    %620 = vmatpush1.msra.mxu0 0.0
    %621 = vmatprep.subr.mxu0 0.0
    %622 = vmatpush1.msra.mxu0 0.0
    %623 = vmatprep.subr.mxu0 0.0
    %624 = vmatpush1.msra.mxu0 0.0
    %625 = vmatprep.subr.mxu0 0.0
    %626 = vmatpush1.msra.mxu0 0.0
    %627 = vmatprep.subr.mxu0 0.0
    %628 = vmatpush1.msra.mxu0 0.0
    %629 = vmatprep.subr.mxu0 0.0
    %630 = vmatpush1.msra.mxu0 0.0
    %631 = vmatprep.subr.mxu0 0.0
    %632 = vmatpush1.msra.mxu0 0.0
    %633 = vmatprep.subr.mxu0 0.0
    %634 = vmatpush1.msra.mxu0 0.0
    %635 = vmatprep.subr.mxu0 0.0
    %636 = vmatpush1.msra.mxu0 0.0
    %637 = vmatprep.subr.mxu0 0.0
    %638 = vmatpush1.msra.mxu0 0.0
    %639 = vmatprep.subr.mxu0 0.0
    %640 = vmatpush1.msra.mxu0 0.0
    %641 = vmatprep.subr.mxu0 0.0
    %642 = vmatpush1.msra.mxu0 0.0
    %643 = vmatprep.subr.mxu0 0.0
    %644 = vmatpush1.msra.mxu0 0.0
    %645 = vmatprep.subr.mxu0 0.0
    %646 = vmatpush1.msra.mxu0 0.0
    %647 = vmatprep.subr.mxu0 0.0
    %648 = vmatpush1.msra.mxu0 0.0
    %649 = vmatprep.subr.mxu0 0.0
    %650 = vmatpush1.msra.mxu0 0.0
    %651 = vmatprep.mubr.f32.mxu0 0.0
    %652 = vmatmul.mubr.f32.gmra.mrb[0].mxu0 %v585
    %v653 = vpop.f32.mrb[0].mxu0
    %v654 = vadd.f32 0.0, %v653
    %v655 = vpop.f32.mrb[0].mxu0
    %656 = vdwg.mxu0
    %v657 = vadd.f32 %v583, %v654
    %v658 = vtanh.pop %v657
    %v659 = vld [vmem:[#allocation2 + $0xe] sm:$0x3]
    %v661 = vsel %vm120, %v658, 0
    %663 = vmatprep.subr.mxu0 0.0
    %664 = vmatpush1.msra.mxu0 %v123
    %665 = vmatprep.subr.mxu0 0.0
    %666 = vmatpush1.msra.mxu0 %v124
    %667 = vmatprep.subr.mxu0 0.0
    %668 = vmatpush1.msra.mxu0 %v125
    %669 = vmatprep.subr.mxu0 0.0
    %670 = vmatpush1.msra.mxu0 %v126
    %671 = vmatprep.subr.mxu0 0.0
    %672 = vmatpush1.msra.mxu0 0.0
    %673 = vmatprep.subr.mxu0 0.0
    %674 = vmatpush1.msra.mxu0 0.0
    %675 = vmatprep.subr.mxu0 0.0
    %676 = vmatpush1.msra.mxu0 0.0
    %677 = vmatprep.subr.mxu0 0.0
    %678 = vmatpush1.msra.mxu0 0.0
    %679 = vmatprep.subr.mxu0 0.0
    %680 = vmatpush1.msra.mxu0 0.0
    %681 = vmatprep.subr.mxu0 0.0
    %682 = vmatpush1.msra.mxu0 0.0
    %683 = vmatprep.subr.mxu0 0.0
    %684 = vmatpush1.msra.mxu0 0.0
    %685 = vmatprep.subr.mxu0 0.0
    %686 = vmatpush1.msra.mxu0 0.0
    %687 = vmatprep.subr.mxu0 0.0
    %688 = vmatpush1.msra.mxu0 0.0
    %689 = vmatprep.subr.mxu0 0.0
    %690 = vmatpush1.msra.mxu0 0.0
    %691 = vmatprep.subr.mxu0 0.0
    %692 = vmatpush1.msra.mxu0 0.0
    %693 = vmatprep.subr.mxu0 0.0
    %694 = vmatpush1.msra.mxu0 0.0
    %695 = vmatprep.subr.mxu0 0.0
    %696 = vmatpush1.msra.mxu0 0.0
    %697 = vmatprep.subr.mxu0 0.0
    %698 = vmatpush1.msra.mxu0 0.0
    %699 = vmatprep.subr.mxu0 0.0
    %700 = vmatpush1.msra.mxu0 0.0
    %701 = vmatprep.subr.mxu0 0.0
    %702 = vmatpush1.msra.mxu0 0.0
    %703 = vmatprep.subr.mxu0 0.0
    %704 = vmatpush1.msra.mxu0 0.0
    %705 = vmatprep.subr.mxu0 0.0
    %706 = vmatpush1.msra.mxu0 0.0
    %707 = vmatprep.subr.mxu0 0.0
    %708 = vmatpush1.msra.mxu0 0.0
    %709 = vmatprep.subr.mxu0 0.0
    %710 = vmatpush1.msra.mxu0 0.0
    %711 = vmatprep.subr.mxu0 0.0
    %712 = vmatpush1.msra.mxu0 0.0
    %713 = vmatprep.subr.mxu0 0.0
    %714 = vmatpush1.msra.mxu0 0.0
    %715 = vmatprep.subr.mxu0 0.0
    %716 = vmatpush1.msra.mxu0 0.0
    %717 = vmatprep.subr.mxu0 0.0
    %718 = vmatpush1.msra.mxu0 0.0
    %719 = vmatprep.subr.mxu0 0.0
    %720 = vmatpush1.msra.mxu0 0.0
    %721 = vmatprep.subr.mxu0 0.0
    %722 = vmatpush1.msra.mxu0 0.0
    %723 = vmatprep.subr.mxu0 0.0
    %724 = vmatpush1.msra.mxu0 0.0
    %725 = vmatprep.subr.mxu0 0.0
    %726 = vmatpush1.msra.mxu0 0.0
    %727 = vmatprep.mubr.f32.mxu0 0.0
    %728 = vmatmul.mubr.f32.gmra.mrb[0].mxu0 %v661
    %v729 = vpop.f32.mrb[0].mxu0
    %v730 = vadd.f32 0.0, %v729
    %v731 = vpop.f32.mrb[0].mxu0
    %732 = vdwg.mxu0
    %v733 = vadd.f32 %v659, %v730
    %v734 = vtanh.pop %v733
    %v735 = vld [vmem:[%s4] sm:$0xff]
    %v736 = vld [vmem:[%s4 + $0x8] sm:$0xff]
    %v737 = vld [vmem:[%s4 + $0x10] sm:$0xff]
    %v738 = vld [vmem:[%s4 + $0x18] sm:$0xff]
    %v739 = vld [vmem:[%s5] sm:$0x1]
    %v741 = vlaneseq
    %v742 = vshrl.u32 %v741, 7
    %v743 = vsub.s32 0, %v742
    %v744 = vrot.slane %v739, %v743
    %v747 = vsel %vm120, %v734, 0
    %749 = vmatprep.subr.mxu0 0.0
    %750 = vmatpush1.msra.mxu0 %v735
    %751 = vmatprep.subr.mxu0 0.0
    %752 = vmatpush1.msra.mxu0 %v736
    %753 = vmatprep.subr.mxu0 0.0
    %754 = vmatpush1.msra.mxu0 %v737
    %755 = vmatprep.subr.mxu0 0.0
    %756 = vmatpush1.msra.mxu0 %v738
    %757 = vmatprep.subr.mxu0 0.0
    %758 = vmatpush1.msra.mxu0 0.0
    %759 = vmatprep.subr.mxu0 0.0
    %760 = vmatpush1.msra.mxu0 0.0
    %761 = vmatprep.subr.mxu0 0.0
    %762 = vmatpush1.msra.mxu0 0.0
    %763 = vmatprep.subr.mxu0 0.0
    %764 = vmatpush1.msra.mxu0 0.0
    %765 = vmatprep.subr.mxu0 0.0
    %766 = vmatpush1.msra.mxu0 0.0
    %767 = vmatprep.subr.mxu0 0.0
    %768 = vmatpush1.msra.mxu0 0.0
    %769 = vmatprep.subr.mxu0 0.0
    %770 = vmatpush1.msra.mxu0 0.0
    %771 = vmatprep.subr.mxu0 0.0
    %772 = vmatpush1.msra.mxu0 0.0
    %773 = vmatprep.subr.mxu0 0.0
    %774 = vmatpush1.msra.mxu0 0.0
    %775 = vmatprep.subr.mxu0 0.0
    %776 = vmatpush1.msra.mxu0 0.0
    %777 = vmatprep.subr.mxu0 0.0
    %778 = vmatpush1.msra.mxu0 0.0
    %779 = vmatprep.subr.mxu0 0.0
    %780 = vmatpush1.msra.mxu0 0.0
    %781 = vmatprep.subr.mxu0 0.0
    %782 = vmatpush1.msra.mxu0 0.0
    %783 = vmatprep.subr.mxu0 0.0
    %784 = vmatpush1.msra.mxu0 0.0
    %785 = vmatprep.subr.mxu0 0.0
    %786 = vmatpush1.msra.mxu0 0.0
    %787 = vmatprep.subr.mxu0 0.0
    %788 = vmatpush1.msra.mxu0 0.0
    %789 = vmatprep.subr.mxu0 0.0
    %790 = vmatpush1.msra.mxu0 0.0
    %791 = vmatprep.subr.mxu0 0.0
    %792 = vmatpush1.msra.mxu0 0.0
    %793 = vmatprep.subr.mxu0 0.0
    %794 = vmatpush1.msra.mxu0 0.0
    %795 = vmatprep.subr.mxu0 0.0
    %796 = vmatpush1.msra.mxu0 0.0
    %797 = vmatprep.subr.mxu0 0.0
    %798 = vmatpush1.msra.mxu0 0.0
    %799 = vmatprep.subr.mxu0 0.0
    %800 = vmatpush1.msra.mxu0 0.0
    %801 = vmatprep.subr.mxu0 0.0
    %802 = vmatpush1.msra.mxu0 0.0
    %803 = vmatprep.subr.mxu0 0.0
    %804 = vmatpush1.msra.mxu0 0.0
    %805 = vmatprep.subr.mxu0 0.0
    %806 = vmatpush1.msra.mxu0 0.0
    %807 = vmatprep.subr.mxu0 0.0
    %808 = vmatpush1.msra.mxu0 0.0
    %809 = vmatprep.subr.mxu0 0.0
    %810 = vmatpush1.msra.mxu0 0.0
    %811 = vmatprep.subr.mxu0 0.0
    %812 = vmatpush1.msra.mxu0 0.0
    %813 = vmatprep.mubr.f32.mxu0 0.0
    %814 = vmatmul.mubr.f32.gmra.mrb[0].mxu0 %v747
    %v815 = vpop.f32.mrb[0].mxu0
    %v816 = vadd.f32 %v744, %v815
    %v817 = vpop.f32.mrb[0].mxu0
    %818 = vdwg.mxu0
    %vm819 = vcmask 25600
    %820 = vst.msk [vmem:[#allocation3] sm:$0x3] %vm819, %v816
    // Predicated region
    $region26: #{tpu_custom_call.1} parent=1 // pred_check
      _
    $region27: #{tpu_custom_call.1} parent=1 // pred_check_branch
      %822 = sbr.rel (0) target = $region29
    $region28: #{tpu_custom_call.1} parent=1 // pred_region
      %s824 = ssub.s32 32, 32
      %825 = vsyncadd [#allocation4], %s824
      %s827 = sshll.u32 [#allocation3], 4
      %s828 = int_to_ptr.vmem [resolvable:$true] %s827
      %830 = dma.vmem_to_hbm [thread:$0]  %s828, 32, %s6, [#allocation4]
    $region29: #{tpu_custom_call.1} parent=1 // pred_fallthru
      _
    // Predicated region
    $region30: #{tpu_custom_call.1} parent=1 // pred_check
      _
    $region31: #{tpu_custom_call.1} parent=1 // pred_check_branch
      %832 = sbr.rel (0) target = $region33
    $region32: #{tpu_custom_call.1} parent=1 // pred_region
      %833 = dma.done [#allocation4], 32
    $region33: #{tpu_custom_call.1} parent=1 // pred_fallthru
      _
    %834 = vsyncpa [#allocation4], 1

</llo_original>
